<compile_context>
chip_gen: v5e
topology: v5e:2x2
jax: 0.10.0
libtpu: 0.0.40
codegen_flags: <defaults>
</compile_context>

<pallas_src>
import jax
import jax.numpy as jnp
from jax.experimental import pallas as pl
from jax.experimental.pallas import tpu as pltpu

DIM_IN = 512
FEAT_DIM = 64
NUM_CLASS = 10
CLS_PAD = 64                                    # classifier padded to 64 lanes
OUT_PACK = 2 * FEAT_DIM + FEAT_DIM + CLS_PAD    # 256: [p1 | p2 | z | logit64]

VMEM_BUDGET = 56 * 1024 * 1024                  # safe on v7x (64 MiB physical)


def _round_up(x, m):
    return (x + m - 1) // m * m


def clippair_kernel(
    f1_ref, f2_ref,
    wp_ref, bp_ref,       # proj:        (512, 64), (1, 64)
    w1_ref, b1_ref,       # pairwise[0]: effective weight (128, 64), (1, 64)
    w2_ref, b2_ref,       # pairwise[2]: (64, 64), (1, 64)
    wc_ref, bc_ref,       # classifier (lane-padded): (64, 64), (1, 64)
    out_ref,              # packed output: (T, 256) = [p1 | p2 | z | logit64]
):
    cdt = wp_ref.dtype    # compute dtype (f32 or bf16); accumulation is f32

    # ---- proj: two (T,512)@(512,64) MXU dots (no (2T,512) VMEM concat) ----
    p1 = jnp.dot(f1_ref[...], wp_ref[...], preferred_element_type=jnp.float32)
    p1 = jnp.maximum(p1 + bp_ref[...], 0.0)                           # (T, 64)
    p2 = jnp.dot(f2_ref[...], wp_ref[...], preferred_element_type=jnp.float32)
    p2 = jnp.maximum(p2 + bp_ref[...], 0.0)                           # (T, 64)

    # lane-dense [p1 | p2] slab: packed output AND the K=128 subcon operand
    p12 = jnp.concatenate([p1, p2], axis=1)                           # (T, 128)

    # ---- pairwise 'subcon' as one K=128 dot:
    #      cat([p1, p2 - p1]) @ w1  ==  [p1 | p2] @ [[w1a - w1b], [w1b]]
    h = jnp.dot(p12.astype(cdt), w1_ref[...],
                preferred_element_type=jnp.float32)
    h = jnp.maximum(h + b1_ref[...], 0.0)                             # (T, 64)

    z = jnp.dot(h.astype(cdt), w2_ref[...],
                preferred_element_type=jnp.float32)
    z = jnp.maximum(z + b2_ref[...], 0.0)                             # (T, 64)

    # classifier lane-padded to 64 outputs -> unmasked result / store
    logit64 = (jnp.dot(z.astype(cdt), wc_ref[...],
                       preferred_element_type=jnp.float32)
               + bc_ref[...])                                         # (T, 64)

    # single lane-dense (T, 256) store
    out_ref[...] = jnp.concatenate([p12, z, logit64],
                                   axis=1).astype(out_ref.dtype)


def _vmem_estimate(tile_b, in_itemsize, out_itemsize):
    return (2 * 2 * tile_b * DIM_IN * in_itemsize      # double-buffered f1/f2
            + 2 * tile_b * OUT_PACK * out_itemsize     # double-buffered output
            + tile_b * 1024 * 4                        # f32 temporaries headroom
            + (2 << 20))                               # weights + slack


def clippair_forward(f1, f2, params, *, tile_b=None, compute_dtype=None,
                     out_dtype=jnp.float32):
    """f1/f2: (B, 512) image features (outputs of encode_image)."""
    assert f1.shape == f2.shape and f1.shape[1] == DIM_IN
    B = f1.shape[0]
    wp, bp, w1, b1, w2, b2, wc, bc = params

    # compute dtype defaults to the producer's dtype -> no wrapper-side astype
    cdt = jnp.dtype(compute_dtype) if compute_dtype is not None \
        else jnp.dtype(f1.dtype)
    if f1.dtype != cdt:
        f1 = f1.astype(cdt)
        f2 = f2.astype(cdt)

    # effective subcon weight (kept in f32, then cast):
    #   cat([p1, p2 - p1]) @ w1 == [p1 | p2] @ [[w1a - w1b], [w1b]]
    w1_eff = jnp.concatenate(
        [w1[:FEAT_DIM] - w1[FEAT_DIM:], w1[FEAT_DIM:]], axis=0)       # (128, 64)

    # classifier padded to 64 output lanes (zero-filled extra columns)
    wc_pad = jnp.zeros((FEAT_DIM, CLS_PAD), wc.dtype).at[:, :NUM_CLASS].set(wc)
    bc_pad = jnp.zeros((1, CLS_PAD), bc.dtype).at[:, :NUM_CLASS].set(bc)

    weights = (
        wp.astype(cdt), bp.astype(jnp.float32),
        w1_eff.astype(cdt), b1.astype(jnp.float32),
        w2.astype(cdt), b2.astype(jnp.float32),
        wc_pad.astype(cdt), bc_pad.astype(jnp.float32),
    )

    # --- batch tile selection -------------------------------------------
    sub = 16 if cdt == jnp.dtype(jnp.bfloat16) else 8   # sublane granule
    if tile_b is None:
        tile_b = 2048 if sub == 16 else 1024
    if B >= 2 * sub:
        # keep >= 2 grid steps (v7x has 2 TCs), multiple of the granule
        tile_b = min(tile_b, _round_up(pl.cdiv(B, 2), sub))
        tile_b = max(sub, _round_up(tile_b, sub))
    else:
        tile_b = B            # tiny batch: one full-extent block (always legal)

    # respect the VMEM budget (v7x: 64 MiB physical; v5e scoped default 16 MiB)
    in_it = cdt.itemsize
    out_it = jnp.dtype(out_dtype).itemsize
    while tile_b > sub and _vmem_estimate(tile_b, in_it, out_it) > VMEM_BUDGET:
        tile_b = max(sub, _round_up(tile_b // 2, sub))
    vmem_limit = int(min(VMEM_BUDGET,
                         max(_vmem_estimate(tile_b, in_it, out_it), 16 << 20)))

    grid = (pl.cdiv(B, tile_b),)       # ragged last block handled by Pallas

    act_spec = pl.BlockSpec((tile_b, DIM_IN), lambda i: (i, 0))
    out_spec = pl.BlockSpec((tile_b, OUT_PACK), lambda i: (i, 0))

    def resident(shape):
        # same block index every grid step -> weight stays VMEM-resident
        return pl.BlockSpec(shape, lambda i: (0, 0))

    in_specs = [act_spec, act_spec] + [resident(w.shape) for w in weights]

    out = pl.pallas_call(
        clippair_kernel,
        out_shape=jax.ShapeDtypeStruct((B, OUT_PACK), out_dtype),
        grid=grid,
        in_specs=in_specs,
        out_specs=out_spec,
        compiler_params=pltpu.CompilerParams(
            dimension_semantics=("parallel",),
            vmem_limit_bytes=vmem_limit),
    )(f1, f2, *weights)

    p1 = out[:, :FEAT_DIM]
    p2 = out[:, FEAT_DIM:2 * FEAT_DIM]
    z = out[:, 2 * FEAT_DIM:3 * FEAT_DIM]
    logit = out[:, 3 * FEAT_DIM:3 * FEAT_DIM + NUM_CLASS]
    return logit, z, p1, p2


def init_params(key):
    ks = jax.random.split(key, 8)

    def w(k, shape, fan_in):
        return jax.random.normal(k, shape, jnp.float32) / jnp.sqrt(fan_in)

    wp = w(ks[0], (DIM_IN, FEAT_DIM), DIM_IN)
    bp = 0.01 * jax.random.normal(ks[1], (1, FEAT_DIM), jnp.float32)
    w1 = w(ks[2], (2 * FEAT_DIM, FEAT_DIM), 2 * FEAT_DIM)
    b1 = 0.01 * jax.random.normal(ks[3], (1, FEAT_DIM), jnp.float32)
    w2 = w(ks[4], (FEAT_DIM, FEAT_DIM), FEAT_DIM)
    b2 = 0.01 * jax.random.normal(ks[5], (1, FEAT_DIM), jnp.float32)
    wc = w(ks[6], (FEAT_DIM, NUM_CLASS), FEAT_DIM)
    bc = 0.01 * jax.random.normal(ks[7], (1, NUM_CLASS), jnp.float32)
    return (wp, bp, w1, b1, w2, b2, wc, bc)


def reference_forward(f1, f2, params):
    wp, bp, w1, b1, w2, b2, wc, bc = params
    p1 = jax.nn.relu(f1 @ wp + bp)
    p2 = jax.nn.relu(f2 @ wp + bp)
    cat = jnp.concatenate([p1, p2 - p1], axis=1)
    h = jax.nn.relu(cat @ w1 + b1)
    z = jax.nn.relu(h @ w2 + b2)
    logit = z @ wc + bc
    return logit, z, p1, p2


if __name__ == "__main__":
    key = jax.random.PRNGKey(0)
    k_params, k_f1, k_f2 = jax.random.split(key, 3)

    params = init_params(k_params)

    # --- small-batch f32 path (single full-extent block) ---
    B = 8
    # f1 / f2 stand in for encoder.encode_image(x1) / encode_image(x2): (B, 512)
    f1 = jax.random.normal(k_f1, (B, DIM_IN), jnp.float32)
    f2 = jax.random.normal(k_f2, (B, DIM_IN), jnp.float32)

    ref = reference_forward(f1, f2, params)
    out_f32 = clippair_forward(f1, f2, params)
    jax.block_until_ready(out_f32)
    for got, want in zip(out_f32, ref):
        assert got.shape == want.shape and got.dtype == want.dtype
        assert jnp.allclose(got, want, atol=1e-3, rtol=1e-3)

    # --- multi-step f32 grid with a ragged last block (no wrapper padding) ---
    B2 = 200
    f1b = jax.random.normal(jax.random.PRNGKey(1), (B2, DIM_IN), jnp.float32)
    f2b = jax.random.normal(jax.random.PRNGKey(2), (B2, DIM_IN), jnp.float32)
    ref2 = reference_forward(f1b, f2b, params)
    out2 = clippair_forward(f1b, f2b, params, tile_b=64)
    jax.block_until_ready(out2)
    for got, want in zip(out2, ref2):
        assert got.shape == want.shape
        assert jnp.allclose(got, want, atol=1e-3, rtol=1e-3)

    # --- bf16 producer path (inputs already bf16, no wrapper cast of acts) ---
    f1h = f1b.astype(jnp.bfloat16)
    f2h = f2b.astype(jnp.bfloat16)
    ref3 = reference_forward(f1h.astype(jnp.float32), f2h.astype(jnp.float32),
                             params)
    out3 = clippair_forward(f1h, f2h, params)
    jax.block_until_ready(out3)
    for got, want in zip(out3, ref3):
        assert got.shape == want.shape
        assert jnp.allclose(got, want, atol=1e-1, rtol=1e-1)

    print("KERNEL_OK")
</pallas_src>

<mosaic_0001>
module attributes {stable_mosaic.version = 11 : i64} {
  func.func @clippair_kernel(%arg0: i32, %arg1: memref<8x512xf32, #tpu.memory_space<vmem>>, %arg2: memref<8x512xf32, #tpu.memory_space<vmem>>, %arg3: memref<512x64xf32, #tpu.memory_space<vmem>>, %arg4: memref<1x64xf32, #tpu.memory_space<vmem>>, %arg5: memref<128x64xf32, #tpu.memory_space<vmem>>, %arg6: memref<1x64xf32, #tpu.memory_space<vmem>>, %arg7: memref<64x64xf32, #tpu.memory_space<vmem>>, %arg8: memref<1x64xf32, #tpu.memory_space<vmem>>, %arg9: memref<64x64xf32, #tpu.memory_space<vmem>>, %arg10: memref<1x64xf32, #tpu.memory_space<vmem>>, %arg11: memref<8x256xf32, #tpu.memory_space<vmem>>) attributes {dimension_semantics = [#tpu.dimension_semantics<parallel>], iteration_bounds = array<i64: 1>, scalar_prefetch = 0 : i64, scratch_operands = 0 : i64, tpu.core_type = #tpu.core_type<tc>, window_params = [{transform_indices = @transform_0, window_bounds = array<i64: 8, 512>}, {transform_indices = @transform_1, window_bounds = array<i64: 8, 512>}, {pipeline_mode = #tpu.pipeline_mode<synchronous>, transform_indices = @transform_2, window_bounds = array<i64: 512, 64>}, {pipeline_mode = #tpu.pipeline_mode<synchronous>, transform_indices = @transform_3, window_bounds = array<i64: 1, 64>}, {pipeline_mode = #tpu.pipeline_mode<synchronous>, transform_indices = @transform_4, window_bounds = array<i64: 128, 64>}, {pipeline_mode = #tpu.pipeline_mode<synchronous>, transform_indices = @transform_5, window_bounds = array<i64: 1, 64>}, {pipeline_mode = #tpu.pipeline_mode<synchronous>, transform_indices = @transform_6, window_bounds = array<i64: 64, 64>}, {pipeline_mode = #tpu.pipeline_mode<synchronous>, transform_indices = @transform_7, window_bounds = array<i64: 1, 64>}, {pipeline_mode = #tpu.pipeline_mode<synchronous>, transform_indices = @transform_8, window_bounds = array<i64: 64, 64>}, {pipeline_mode = #tpu.pipeline_mode<synchronous>, transform_indices = @transform_9, window_bounds = array<i64: 1, 64>}, {transform_indices = @transform_10, window_bounds = array<i64: 8, 256>}]} {
    %c0 = arith.constant 0 : index
    %c0_0 = arith.constant 0 : index
    %0 = vector.load %arg1[%c0, %c0_0] : memref<8x512xf32, #tpu.memory_space<vmem>>, vector<8x512xf32>
    %c0_1 = arith.constant 0 : index
    %c0_2 = arith.constant 0 : index
    %1 = vector.load %arg3[%c0_1, %c0_2] : memref<512x64xf32, #tpu.memory_space<vmem>>, vector<512x64xf32>
    %cst = arith.constant dense<0.000000e+00> : vector<8x64xf32>
    %2 = tpu.matmul %0, %1, %cst {dimension_numbers = #tpu.dot_dimension_numbers<[1], [0], [0], [1], [0, 0, 1, 1], [], []>} : vector<8x512xf32>, vector<512x64xf32>, vector<8x64xf32> -> vector<8x64xf32>
    %c0_3 = arith.constant 0 : index
    %c0_4 = arith.constant 0 : index
    %3 = vector.load %arg4[%c0_3, %c0_4] : memref<1x64xf32, #tpu.memory_space<vmem>>, vector<1x64xf32>
    %4 = vector.broadcast %3 : vector<1x64xf32> to vector<8x64xf32>
    %5 = arith.addf %2, %4 : vector<8x64xf32>
    %cst_5 = arith.constant 0.000000e+00 : f32
    %6 = vector.broadcast %cst_5 : f32 to vector<8x64xf32>
    %7 = arith.maximumf %5, %6 : vector<8x64xf32>
    %c0_6 = arith.constant 0 : index
    %c0_7 = arith.constant 0 : index
    %8 = vector.load %arg2[%c0_6, %c0_7] : memref<8x512xf32, #tpu.memory_space<vmem>>, vector<8x512xf32>
    %c0_8 = arith.constant 0 : index
    %c0_9 = arith.constant 0 : index
    %9 = vector.load %arg3[%c0_8, %c0_9] : memref<512x64xf32, #tpu.memory_space<vmem>>, vector<512x64xf32>
    %cst_10 = arith.constant dense<0.000000e+00> : vector<8x64xf32>
    %10 = tpu.matmul %8, %9, %cst_10 {dimension_numbers = #tpu.dot_dimension_numbers<[1], [0], [0], [1], [0, 0, 1, 1], [], []>} : vector<8x512xf32>, vector<512x64xf32>, vector<8x64xf32> -> vector<8x64xf32>
    %c0_11 = arith.constant 0 : index
    %c0_12 = arith.constant 0 : index
    %11 = vector.load %arg4[%c0_11, %c0_12] : memref<1x64xf32, #tpu.memory_space<vmem>>, vector<1x64xf32>
    %12 = vector.broadcast %11 : vector<1x64xf32> to vector<8x64xf32>
    %13 = arith.addf %10, %12 : vector<8x64xf32>
    %cst_13 = arith.constant 0.000000e+00 : f32
    %14 = vector.broadcast %cst_13 : f32 to vector<8x64xf32>
    %15 = arith.maximumf %13, %14 : vector<8x64xf32>
    %16 = tpu.concatenate %7, %15 in 1 : vector<8x64xf32>, vector<8x64xf32> -> vector<8x128xf32>
    %c0_14 = arith.constant 0 : index
    %c0_15 = arith.constant 0 : index
    %17 = vector.load %arg5[%c0_14, %c0_15] : memref<128x64xf32, #tpu.memory_space<vmem>>, vector<128x64xf32>
    %cst_16 = arith.constant dense<0.000000e+00> : vector<8x64xf32>
    %18 = tpu.matmul %16, %17, %cst_16 {dimension_numbers = #tpu.dot_dimension_numbers<[1], [0], [0], [1], [0, 0, 1, 1], [], []>} : vector<8x128xf32>, vector<128x64xf32>, vector<8x64xf32> -> vector<8x64xf32>
    %c0_17 = arith.constant 0 : index
    %c0_18 = arith.constant 0 : index
    %19 = vector.load %arg6[%c0_17, %c0_18] : memref<1x64xf32, #tpu.memory_space<vmem>>, vector<1x64xf32>
    %20 = vector.broadcast %19 : vector<1x64xf32> to vector<8x64xf32>
    %21 = arith.addf %18, %20 : vector<8x64xf32>
    %cst_19 = arith.constant 0.000000e+00 : f32
    %22 = vector.broadcast %cst_19 : f32 to vector<8x64xf32>
    %23 = arith.maximumf %21, %22 : vector<8x64xf32>
    %c0_20 = arith.constant 0 : index
    %c0_21 = arith.constant 0 : index
    %24 = vector.load %arg7[%c0_20, %c0_21] : memref<64x64xf32, #tpu.memory_space<vmem>>, vector<64x64xf32>
    %cst_22 = arith.constant dense<0.000000e+00> : vector<8x64xf32>
    %25 = tpu.matmul %23, %24, %cst_22 {dimension_numbers = #tpu.dot_dimension_numbers<[1], [0], [0], [1], [0, 0, 1, 1], [], []>} : vector<8x64xf32>, vector<64x64xf32>, vector<8x64xf32> -> vector<8x64xf32>
    %c0_23 = arith.constant 0 : index
    %c0_24 = arith.constant 0 : index
    %26 = vector.load %arg8[%c0_23, %c0_24] : memref<1x64xf32, #tpu.memory_space<vmem>>, vector<1x64xf32>
    %27 = vector.broadcast %26 : vector<1x64xf32> to vector<8x64xf32>
    %28 = arith.addf %25, %27 : vector<8x64xf32>
    %cst_25 = arith.constant 0.000000e+00 : f32
    %29 = vector.broadcast %cst_25 : f32 to vector<8x64xf32>
    %30 = arith.maximumf %28, %29 : vector<8x64xf32>
    %c0_26 = arith.constant 0 : index
    %c0_27 = arith.constant 0 : index
    %31 = vector.load %arg9[%c0_26, %c0_27] : memref<64x64xf32, #tpu.memory_space<vmem>>, vector<64x64xf32>
    %cst_28 = arith.constant dense<0.000000e+00> : vector<8x64xf32>
    %32 = tpu.matmul %30, %31, %cst_28 {dimension_numbers = #tpu.dot_dimension_numbers<[1], [0], [0], [1], [0, 0, 1, 1], [], []>} : vector<8x64xf32>, vector<64x64xf32>, vector<8x64xf32> -> vector<8x64xf32>
    %c0_29 = arith.constant 0 : index
    %c0_30 = arith.constant 0 : index
    %33 = vector.load %arg10[%c0_29, %c0_30] : memref<1x64xf32, #tpu.memory_space<vmem>>, vector<1x64xf32>
    %34 = vector.broadcast %33 : vector<1x64xf32> to vector<8x64xf32>
    %35 = arith.addf %32, %34 : vector<8x64xf32>
    %36 = tpu.concatenate %16, %30, %35 in 1 : vector<8x128xf32>, vector<8x64xf32>, vector<8x64xf32> -> vector<8x256xf32>
    %c0_31 = arith.constant 0 : index
    %c0_32 = arith.constant 0 : index
    %37 = vector.load %arg11[%c0_31, %c0_32] : memref<8x256xf32, #tpu.memory_space<vmem>>, vector<8x256xf32>
    tpu.vector_store %arg11[%c0_31, %c0_32], %36 {strides = array<i32>} : memref<8x256xf32, #tpu.memory_space<vmem>>, vector<8x256xf32>,
    return
  }
  func.func @transform_0(%arg0: i32) -> (i32, i32) {
    %c0_i32 = arith.constant 0 : i32
    %c0_i32_0 = arith.constant 0 : i32
    return %arg0, %c0_i32 : i32, i32
  }
  func.func @transform_1(%arg0: i32) -> (i32, i32) {
    %c0_i32 = arith.constant 0 : i32
    %c0_i32_0 = arith.constant 0 : i32
    return %arg0, %c0_i32 : i32, i32
  }
  func.func @transform_2(%arg0: i32) -> (i32, i32) {
    %c0_i32 = arith.constant 0 : i32
    %c0_i32_0 = arith.constant 0 : i32
    %c0_i32_1 = arith.constant 0 : i32
    return %c0_i32, %c0_i32_0 : i32, i32
  }
  func.func @transform_3(%arg0: i32) -> (i32, i32) {
    %c0_i32 = arith.constant 0 : i32
    %c0_i32_0 = arith.constant 0 : i32
    %c0_i32_1 = arith.constant 0 : i32
    return %c0_i32, %c0_i32_0 : i32, i32
  }
  func.func @transform_4(%arg0: i32) -> (i32, i32) {
    %c0_i32 = arith.constant 0 : i32
    %c0_i32_0 = arith.constant 0 : i32
    %c0_i32_1 = arith.constant 0 : i32
    return %c0_i32, %c0_i32_0 : i32, i32
  }
  func.func @transform_5(%arg0: i32) -> (i32, i32) {
    %c0_i32 = arith.constant 0 : i32
    %c0_i32_0 = arith.constant 0 : i32
    %c0_i32_1 = arith.constant 0 : i32
    return %c0_i32, %c0_i32_0 : i32, i32
  }
  func.func @transform_6(%arg0: i32) -> (i32, i32) {
    %c0_i32 = arith.constant 0 : i32
    %c0_i32_0 = arith.constant 0 : i32
    %c0_i32_1 = arith.constant 0 : i32
    return %c0_i32, %c0_i32_0 : i32, i32
  }
  func.func @transform_7(%arg0: i32) -> (i32, i32) {
    %c0_i32 = arith.constant 0 : i32
    %c0_i32_0 = arith.constant 0 : i32
    %c0_i32_1 = arith.constant 0 : i32
    return %c0_i32, %c0_i32_0 : i32, i32
  }
  func.func @transform_8(%arg0: i32) -> (i32, i32) {
    %c0_i32 = arith.constant 0 : i32
    %c0_i32_0 = arith.constant 0 : i32
    %c0_i32_1 = arith.constant 0 : i32
    return %c0_i32, %c0_i32_0 : i32, i32
  }
  func.func @transform_9(%arg0: i32) -> (i32, i32) {
    %c0_i32 = arith.constant 0 : i32
    %c0_i32_0 = arith.constant 0 : i32
    %c0_i32_1 = arith.constant 0 : i32
    return %c0_i32, %c0_i32_0 : i32, i32
  }
  func.func @transform_10(%arg0: i32) -> (i32, i32) {
    %c0_i32 = arith.constant 0 : i32
    %c0_i32_0 = arith.constant 0 : i32
    return %arg0, %c0_i32 : i32, i32
  }
}

</mosaic_0001>

<llo_original>
// kernel: tpu_custom_call.1
$region0: #{tpu_custom_call.1}
  #allocation0 [shape = 'u32[]', space=smem, size = 0x4, offset = 0x4, fixed_abs, tag = 'smem constant byte address 0x4 - core index']
  #allocation1 [shape = 'u32[72,128]{1,0:T(1,128)}', space=vmem, size = 0x9000, scoped, tag = 'internal scratch']
  %s0 = inlined_call_operand.vmem [shape: f32[8,512], index: 0, kind: input, shape index: {}]
  %s1 = inlined_call_operand.vmem [shape: f32[8,512], index: 1, kind: input, shape index: {}]
  %s2 = inlined_call_operand.vmem [shape: f32[512,64], index: 2, kind: input, shape index: {}]
  %s3 = inlined_call_operand.vmem [shape: f32[1,64], index: 3, kind: input, shape index: {}]
  %s4 = inlined_call_operand.vmem [shape: f32[128,64], index: 4, kind: input, shape index: {}]
  %s5 = inlined_call_operand.vmem [shape: f32[1,64], index: 5, kind: input, shape index: {}]
  %s6 = inlined_call_operand.vmem [shape: f32[64,64], index: 6, kind: input, shape index: {}]
  %s7 = inlined_call_operand.vmem [shape: f32[1,64], index: 7, kind: input, shape index: {}]
  %s8 = inlined_call_operand.vmem [shape: f32[64,64], index: 8, kind: input, shape index: {}]
  %s9 = inlined_call_operand.vmem [shape: f32[1,64], index: 9, kind: input, shape index: {}]
  %s10 = inlined_call_operand.hbm [shape: f32[8,256], index: 10, kind: output, shape index: {}]
  %s11 = sld [smem:[#allocation0]]
  $region50: #{tpu_custom_call.1} parent=0
    _
  %s13 = ssub.s32 1, %s11
  %s14 = scalar_select 0, %s13, %s11
  $region1: #{tpu_custom_call.1} parent=0
    #allocation2 [shape = 'u8[8192]{0}', space=vmem, size = 0x2000, scoped, tag = 'output window, operand 0, single buffered']
    #allocation3 [shape = 's32[1]{0}', space=sflag, size = 0x4, scoped, tag = 'scoped memory for tpu_custom_call.1']
    %15 = vsyncpa [#allocation3], 0
    // Predicated region
    $region2: #{tpu_custom_call.1} parent=1 // pred_check
      _
    $region3: #{tpu_custom_call.1} parent=1 // pred_check_branch
      %17 = sbr.rel (0) target = $region5
    $region4: #{tpu_custom_call.1} parent=1 // pred_region
      _
    $region5: #{tpu_custom_call.1} parent=1 // pred_fallthru
      _
    // Predicated region
    $region6: #{tpu_custom_call.1} parent=1 // pred_check
      _
    $region7: #{tpu_custom_call.1} parent=1 // pred_check_branch
      %19 = sbr.rel (0) target = $region9
    $region8: #{tpu_custom_call.1} parent=1 // pred_region
      _
    $region9: #{tpu_custom_call.1} parent=1 // pred_fallthru
      _
    // Predicated region
    $region10: #{tpu_custom_call.1} parent=1 // pred_check
      _
    $region11: #{tpu_custom_call.1} parent=1 // pred_check_branch
      %21 = sbr.rel (0) target = $region13
    $region12: #{tpu_custom_call.1} parent=1 // pred_region
      _
    $region13: #{tpu_custom_call.1} parent=1 // pred_fallthru
      _
    // Predicated region
    $region14: #{tpu_custom_call.1} parent=1 // pred_check
      _
    $region15: #{tpu_custom_call.1} parent=1 // pred_check_branch
      %23 = sbr.rel (0) target = $region17
    $region16: #{tpu_custom_call.1} parent=1 // pred_region
      _
    $region17: #{tpu_custom_call.1} parent=1 // pred_fallthru
      _
    // Predicated region
    $region18: #{tpu_custom_call.1} parent=1 // pred_check
      _
    $region19: #{tpu_custom_call.1} parent=1 // pred_check_branch
      %25 = sbr.rel (0) target = $region21
    $region20: #{tpu_custom_call.1} parent=1 // pred_region
      _
    $region21: #{tpu_custom_call.1} parent=1 // pred_fallthru
      _
    // Predicated region
    $region22: #{tpu_custom_call.1} parent=1 // pred_check
      _
    $region23: #{tpu_custom_call.1} parent=1 // pred_check_branch
      %27 = sbr.rel (0) target = $region25
    $region24: #{tpu_custom_call.1} parent=1 // pred_region
      _
    $region25: #{tpu_custom_call.1} parent=1 // pred_fallthru
      _
    // Predicated region
    $region26: #{tpu_custom_call.1} parent=1 // pred_check
      _
    $region27: #{tpu_custom_call.1} parent=1 // pred_check_branch
      %29 = sbr.rel (0) target = $region29
    $region28: #{tpu_custom_call.1} parent=1 // pred_region
      _
    $region29: #{tpu_custom_call.1} parent=1 // pred_fallthru
      _
    // Predicated region
    $region30: #{tpu_custom_call.1} parent=1 // pred_check
      _
    $region31: #{tpu_custom_call.1} parent=1 // pred_check_branch
      %31 = sbr.rel (0) target = $region33
    $region32: #{tpu_custom_call.1} parent=1 // pred_region
      _
    $region33: #{tpu_custom_call.1} parent=1 // pred_fallthru
      _
    // Predicated region
    $region34: #{tpu_custom_call.1} parent=1 // pred_check
      _
    $region35: #{tpu_custom_call.1} parent=1 // pred_check_branch
      %33 = sbr.rel (0) target = $region37
    $region36: #{tpu_custom_call.1} parent=1 // pred_region
      _
    $region37: #{tpu_custom_call.1} parent=1 // pred_fallthru
      _
    // Predicated region
    $region38: #{tpu_custom_call.1} parent=1 // pred_check
      _
    $region39: #{tpu_custom_call.1} parent=1 // pred_check_branch
      %35 = sbr.rel (0) target = $region41
    $region40: #{tpu_custom_call.1} parent=1 // pred_region
      _
    $region41: #{tpu_custom_call.1} parent=1 // pred_fallthru
      _
    %v36 = vld [vmem:[%s0] sm:$0xff]
    %v37 = vld [vmem:[%s0 + $0x8] sm:$0xff]
    %v38 = vld [vmem:[%s0 + $0x10] sm:$0xff]
    %v39 = vld [vmem:[%s0 + $0x18] sm:$0xff]
    %v40 = vld [vmem:[%s2] sm:$0xff]
    %v41 = vld [vmem:[%s2 + $0x8] sm:$0xff]
    %v42 = vld [vmem:[%s2 + $0x10] sm:$0xff]
    %v43 = vld [vmem:[%s2 + $0x18] sm:$0xff]
    %v44 = vld [vmem:[%s2 + $0x20] sm:$0xff]
    %v45 = vld [vmem:[%s2 + $0x28] sm:$0xff]
    %v46 = vld [vmem:[%s2 + $0x30] sm:$0xff]
    %v47 = vld [vmem:[%s2 + $0x38] sm:$0xff]
    %v48 = vld [vmem:[%s2 + $0x40] sm:$0xff]
    %v49 = vld [vmem:[%s2 + $0x48] sm:$0xff]
    %v50 = vld [vmem:[%s2 + $0x50] sm:$0xff]
    %v51 = vld [vmem:[%s2 + $0x58] sm:$0xff]
    %v52 = vld [vmem:[%s2 + $0x60] sm:$0xff]
    %v53 = vld [vmem:[%s2 + $0x68] sm:$0xff]
    %v54 = vld [vmem:[%s2 + $0x70] sm:$0xff]
    %v55 = vld [vmem:[%s2 + $0x78] sm:$0xff]
    %v56 = vld [vmem:[%s2 + $0x80] sm:$0xff]
    %v57 = vld [vmem:[%s2 + $0x88] sm:$0xff]
    %v58 = vld [vmem:[%s2 + $0x90] sm:$0xff]
    %v59 = vld [vmem:[%s2 + $0x98] sm:$0xff]
    %v60 = vld [vmem:[%s2 + $0xa0] sm:$0xff]
    %v61 = vld [vmem:[%s2 + $0xa8] sm:$0xff]
    %v62 = vld [vmem:[%s2 + $0xb0] sm:$0xff]
    %v63 = vld [vmem:[%s2 + $0xb8] sm:$0xff]
    %v64 = vld [vmem:[%s2 + $0xc0] sm:$0xff]
    %v65 = vld [vmem:[%s2 + $0xc8] sm:$0xff]
    %v66 = vld [vmem:[%s2 + $0xd0] sm:$0xff]
    %v67 = vld [vmem:[%s2 + $0xd8] sm:$0xff]
    %v68 = vld [vmem:[%s2 + $0xe0] sm:$0xff]
    %v69 = vld [vmem:[%s2 + $0xe8] sm:$0xff]
    %v70 = vld [vmem:[%s2 + $0xf0] sm:$0xff]
    %v71 = vld [vmem:[%s2 + $0xf8] sm:$0xff]
    %v72 = vld [vmem:[%s2 + $0x100] sm:$0xff]
    %v73 = vld [vmem:[%s2 + $0x108] sm:$0xff]
    %v74 = vld [vmem:[%s2 + $0x110] sm:$0xff]
    %v75 = vld [vmem:[%s2 + $0x118] sm:$0xff]
    %v76 = vld [vmem:[%s2 + $0x120] sm:$0xff]
    %v77 = vld [vmem:[%s2 + $0x128] sm:$0xff]
    %v78 = vld [vmem:[%s2 + $0x130] sm:$0xff]
    %v79 = vld [vmem:[%s2 + $0x138] sm:$0xff]
    %v80 = vld [vmem:[%s2 + $0x140] sm:$0xff]
    %v81 = vld [vmem:[%s2 + $0x148] sm:$0xff]
    %v82 = vld [vmem:[%s2 + $0x150] sm:$0xff]
    %v83 = vld [vmem:[%s2 + $0x158] sm:$0xff]
    %v84 = vld [vmem:[%s2 + $0x160] sm:$0xff]
    %v85 = vld [vmem:[%s2 + $0x168] sm:$0xff]
    %v86 = vld [vmem:[%s2 + $0x170] sm:$0xff]
    %v87 = vld [vmem:[%s2 + $0x178] sm:$0xff]
    %v88 = vld [vmem:[%s2 + $0x180] sm:$0xff]
    %v89 = vld [vmem:[%s2 + $0x188] sm:$0xff]
    %v90 = vld [vmem:[%s2 + $0x190] sm:$0xff]
    %v91 = vld [vmem:[%s2 + $0x198] sm:$0xff]
    %v92 = vld [vmem:[%s2 + $0x1a0] sm:$0xff]
    %v93 = vld [vmem:[%s2 + $0x1a8] sm:$0xff]
    %v94 = vld [vmem:[%s2 + $0x1b0] sm:$0xff]
    %v95 = vld [vmem:[%s2 + $0x1b8] sm:$0xff]
    %v96 = vld [vmem:[%s2 + $0x1c0] sm:$0xff]
    %v97 = vld [vmem:[%s2 + $0x1c8] sm:$0xff]
    %v98 = vld [vmem:[%s2 + $0x1d0] sm:$0xff]
    %v99 = vld [vmem:[%s2 + $0x1d8] sm:$0xff]
    %v100 = vld [vmem:[%s2 + $0x1e0] sm:$0xff]
    %v101 = vld [vmem:[%s2 + $0x1e8] sm:$0xff]
    %v102 = vld [vmem:[%s2 + $0x1f0] sm:$0xff]
    %v103 = vld [vmem:[%s2 + $0x1f8] sm:$0xff]
    %v104 = vld [vmem:[%s3] sm:$0x1]
    %v106 = vperm.slane %v104, 0
    %108 = vmatpush.msra.mxu0 %v55
    %109 = vmatpush.msra.mxu0 %v54
    %110 = vmatpush.msra.mxu0 %v53
    %111 = vmatpush.msra.mxu0 %v52
    %112 = vmatpush.msra.mxu0 %v51
    %113 = vmatpush.msra.mxu0 %v50
    %114 = vmatpush.msra.mxu0 %v49
    %115 = vmatpush.msra.mxu0 %v48
    %116 = vmatpush.msra.mxu0 %v47
    %117 = vmatpush.msra.mxu0 %v46
    %118 = vmatpush.msra.mxu0 %v45
    %119 = vmatpush.msra.mxu0 %v44
    %120 = vmatpush.msra.mxu0 %v43
    %121 = vmatpush.msra.mxu0 %v42
    %122 = vmatpush.msra.mxu0 %v41
    %123 = vmatpush.msra.mxu0 %v40
    %124 = vmatmul.f32.gmra.mxu0 %v36
    %v125 = vpop.f32.mrf.mxu0
    %v126 = vadd.f32 %v106, %v125
    %127 = vdwg.mxu0
    %128 = vmatpush.msra.mxu0 %v71
    %129 = vmatpush.msra.mxu0 %v70
    %130 = vmatpush.msra.mxu0 %v69
    %131 = vmatpush.msra.mxu0 %v68
    %132 = vmatpush.msra.mxu0 %v67
    %133 = vmatpush.msra.mxu0 %v66
    %134 = vmatpush.msra.mxu0 %v65
    %135 = vmatpush.msra.mxu0 %v64
    %136 = vmatpush.msra.mxu0 %v63
    %137 = vmatpush.msra.mxu0 %v62
    %138 = vmatpush.msra.mxu0 %v61
    %139 = vmatpush.msra.mxu0 %v60
    %140 = vmatpush.msra.mxu0 %v59
    %141 = vmatpush.msra.mxu0 %v58
    %142 = vmatpush.msra.mxu0 %v57
    %143 = vmatpush.msra.mxu0 %v56
    %144 = vmatmul.f32.gmra.mxu0 %v37
    %v145 = vpop.f32.mrf.mxu0
    %v146 = vadd.f32 %v126, %v145
    %147 = vdwg.mxu0
    %148 = vmatpush.msra.mxu0 %v87
    %149 = vmatpush.msra.mxu0 %v86
    %150 = vmatpush.msra.mxu0 %v85
    %151 = vmatpush.msra.mxu0 %v84
    %152 = vmatpush.msra.mxu0 %v83
    %153 = vmatpush.msra.mxu0 %v82
    %154 = vmatpush.msra.mxu0 %v81
    %155 = vmatpush.msra.mxu0 %v80
    %156 = vmatpush.msra.mxu0 %v79
    %157 = vmatpush.msra.mxu0 %v78
    %158 = vmatpush.msra.mxu0 %v77
    %159 = vmatpush.msra.mxu0 %v76
    %160 = vmatpush.msra.mxu0 %v75
    %161 = vmatpush.msra.mxu0 %v74
    %162 = vmatpush.msra.mxu0 %v73
    %163 = vmatpush.msra.mxu0 %v72
    %164 = vmatmul.f32.gmra.mxu0 %v38
    %v165 = vpop.f32.mrf.mxu0
    %v166 = vadd.f32 %v146, %v165
    %167 = vdwg.mxu0
    %168 = vmatpush.msra.mxu0 %v103
    %169 = vmatpush.msra.mxu0 %v102
    %170 = vmatpush.msra.mxu0 %v101
    %171 = vmatpush.msra.mxu0 %v100
    %172 = vmatpush.msra.mxu0 %v99
    %173 = vmatpush.msra.mxu0 %v98
    %174 = vmatpush.msra.mxu0 %v97
    %175 = vmatpush.msra.mxu0 %v96
    %176 = vmatpush.msra.mxu0 %v95
    %177 = vmatpush.msra.mxu0 %v94
    %178 = vmatpush.msra.mxu0 %v93
    %179 = vmatpush.msra.mxu0 %v92
    %180 = vmatpush.msra.mxu0 %v91
    %181 = vmatpush.msra.mxu0 %v90
    %182 = vmatpush.msra.mxu0 %v89
    %183 = vmatpush.msra.mxu0 %v88
    %184 = vmatmul.f32.gmra.mxu0 %v39
    %v185 = vpop.f32.mrf.mxu0
    %v186 = vadd.f32 %v166, %v185
    %187 = vdwg.mxu0
    %v188 = vmax.f32 %v186, 0.0
    %v189 = vld [vmem:[%s1] sm:$0xff]
    %v190 = vld [vmem:[%s1 + $0x8] sm:$0xff]
    %v191 = vld [vmem:[%s1 + $0x10] sm:$0xff]
    %v192 = vld [vmem:[%s1 + $0x18] sm:$0xff]
    %193 = vmatpush.msra.mxu0 %v55
    %194 = vmatpush.msra.mxu0 %v54
    %195 = vmatpush.msra.mxu0 %v53
    %196 = vmatpush.msra.mxu0 %v52
    %197 = vmatpush.msra.mxu0 %v51
    %198 = vmatpush.msra.mxu0 %v50
    %199 = vmatpush.msra.mxu0 %v49
    %200 = vmatpush.msra.mxu0 %v48
    %201 = vmatpush.msra.mxu0 %v47
    %202 = vmatpush.msra.mxu0 %v46
    %203 = vmatpush.msra.mxu0 %v45
    %204 = vmatpush.msra.mxu0 %v44
    %205 = vmatpush.msra.mxu0 %v43
    %206 = vmatpush.msra.mxu0 %v42
    %207 = vmatpush.msra.mxu0 %v41
    %208 = vmatpush.msra.mxu0 %v40
    %209 = vmatmul.f32.gmra.mxu0 %v189
    %v210 = vpop.f32.mrf.mxu0
    %v211 = vadd.f32 %v106, %v210
    %212 = vdwg.mxu0
    %213 = vmatpush.msra.mxu0 %v71
    %214 = vmatpush.msra.mxu0 %v70
    %215 = vmatpush.msra.mxu0 %v69
    %216 = vmatpush.msra.mxu0 %v68
    %217 = vmatpush.msra.mxu0 %v67
    %218 = vmatpush.msra.mxu0 %v66
    %219 = vmatpush.msra.mxu0 %v65
    %220 = vmatpush.msra.mxu0 %v64
    %221 = vmatpush.msra.mxu0 %v63
    %222 = vmatpush.msra.mxu0 %v62
    %223 = vmatpush.msra.mxu0 %v61
    %224 = vmatpush.msra.mxu0 %v60
    %225 = vmatpush.msra.mxu0 %v59
    %226 = vmatpush.msra.mxu0 %v58
    %227 = vmatpush.msra.mxu0 %v57
    %228 = vmatpush.msra.mxu0 %v56
    %229 = vmatmul.f32.gmra.mxu0 %v190
    %v230 = vpop.f32.mrf.mxu0
    %v231 = vadd.f32 %v211, %v230
    %232 = vdwg.mxu0
    %233 = vmatpush.msra.mxu0 %v87
    %234 = vmatpush.msra.mxu0 %v86
    %235 = vmatpush.msra.mxu0 %v85
    %236 = vmatpush.msra.mxu0 %v84
    %237 = vmatpush.msra.mxu0 %v83
    %238 = vmatpush.msra.mxu0 %v82
    %239 = vmatpush.msra.mxu0 %v81
    %240 = vmatpush.msra.mxu0 %v80
    %241 = vmatpush.msra.mxu0 %v79
    %242 = vmatpush.msra.mxu0 %v78
    %243 = vmatpush.msra.mxu0 %v77
    %244 = vmatpush.msra.mxu0 %v76
    %245 = vmatpush.msra.mxu0 %v75
    %246 = vmatpush.msra.mxu0 %v74
    %247 = vmatpush.msra.mxu0 %v73
    %248 = vmatpush.msra.mxu0 %v72
    %249 = vmatmul.f32.gmra.mxu0 %v191
    %v250 = vpop.f32.mrf.mxu0
    %v251 = vadd.f32 %v231, %v250
    %252 = vdwg.mxu0
    %253 = vmatpush.msra.mxu0 %v103
    %254 = vmatpush.msra.mxu0 %v102
    %255 = vmatpush.msra.mxu0 %v101
    %256 = vmatpush.msra.mxu0 %v100
    %257 = vmatpush.msra.mxu0 %v99
    %258 = vmatpush.msra.mxu0 %v98
    %259 = vmatpush.msra.mxu0 %v97
    %260 = vmatpush.msra.mxu0 %v96
    %261 = vmatpush.msra.mxu0 %v95
    %262 = vmatpush.msra.mxu0 %v94
    %263 = vmatpush.msra.mxu0 %v93
    %264 = vmatpush.msra.mxu0 %v92
    %265 = vmatpush.msra.mxu0 %v91
    %266 = vmatpush.msra.mxu0 %v90
    %267 = vmatpush.msra.mxu0 %v89
    %268 = vmatpush.msra.mxu0 %v88
    %269 = vmatmul.f32.gmra.mxu0 %v192
    %v270 = vpop.f32.mrf.mxu0
    %v271 = vadd.f32 %v251, %v270
    %272 = vdwg.mxu0
    %v273 = vmax.f32 %v271, 0.0
    %275 = vrot.lane.b32.xlu0 %v273, 64
    %v276 = vpop.permute.xlu0 %275
    %vm278 = vcmask 523264
    %v279 = vsel %vm278, %v188, %v276
    %v280 = vld [vmem:[%s4] sm:$0xff]
    %v281 = vld [vmem:[%s4 + $0x8] sm:$0xff]
    %v282 = vld [vmem:[%s4 + $0x10] sm:$0xff]
    %v283 = vld [vmem:[%s4 + $0x18] sm:$0xff]
    %v284 = vld [vmem:[%s4 + $0x20] sm:$0xff]
    %v285 = vld [vmem:[%s4 + $0x28] sm:$0xff]
    %v286 = vld [vmem:[%s4 + $0x30] sm:$0xff]
    %v287 = vld [vmem:[%s4 + $0x38] sm:$0xff]
    %v288 = vld [vmem:[%s4 + $0x40] sm:$0xff]
    %v289 = vld [vmem:[%s4 + $0x48] sm:$0xff]
    %v290 = vld [vmem:[%s4 + $0x50] sm:$0xff]
    %v291 = vld [vmem:[%s4 + $0x58] sm:$0xff]
    %v292 = vld [vmem:[%s4 + $0x60] sm:$0xff]
    %v293 = vld [vmem:[%s4 + $0x68] sm:$0xff]
    %v294 = vld [vmem:[%s4 + $0x70] sm:$0xff]
    %v295 = vld [vmem:[%s4 + $0x78] sm:$0xff]
    %v296 = vld [vmem:[%s5] sm:$0x1]
    %v298 = vperm.slane %v296, 0
    %300 = vmatpush.msra.mxu0 %v295
    %301 = vmatpush.msra.mxu0 %v294
    %302 = vmatpush.msra.mxu0 %v293
    %303 = vmatpush.msra.mxu0 %v292
    %304 = vmatpush.msra.mxu0 %v291
    %305 = vmatpush.msra.mxu0 %v290
    %306 = vmatpush.msra.mxu0 %v289
    %307 = vmatpush.msra.mxu0 %v288
    %308 = vmatpush.msra.mxu0 %v287
    %309 = vmatpush.msra.mxu0 %v286
    %310 = vmatpush.msra.mxu0 %v285
    %311 = vmatpush.msra.mxu0 %v284
    %312 = vmatpush.msra.mxu0 %v283
    %313 = vmatpush.msra.mxu0 %v282
    %314 = vmatpush.msra.mxu0 %v281
    %315 = vmatpush.msra.mxu0 %v280
    %316 = vmatmul.f32.gmra.mxu0 %v279
    %v317 = vpop.f32.mrf.mxu0
    %v318 = vadd.f32 %v298, %v317
    %319 = vdwg.mxu0
    %v320 = vmax.f32 %v318, 0.0
    %v321 = vld [vmem:[%s6] sm:$0xff]
    %v322 = vld [vmem:[%s6 + $0x8] sm:$0xff]
    %v323 = vld [vmem:[%s6 + $0x10] sm:$0xff]
    %v324 = vld [vmem:[%s6 + $0x18] sm:$0xff]
    %v325 = vld [vmem:[%s6 + $0x20] sm:$0xff]
    %v326 = vld [vmem:[%s6 + $0x28] sm:$0xff]
    %v327 = vld [vmem:[%s6 + $0x30] sm:$0xff]
    %v328 = vld [vmem:[%s6 + $0x38] sm:$0xff]
    %v329 = vld [vmem:[%s7] sm:$0x1]
    %v331 = vperm.slane %v329, 0
    %v334 = vsel %vm278, %v320, 0
    %336 = vmatpush.msra.mxu0 0.0
    %337 = vmatpush.msra.mxu0 0.0
    %338 = vmatpush.msra.mxu0 0.0
    %339 = vmatpush.msra.mxu0 0.0
    %340 = vmatpush.msra.mxu0 0.0
    %341 = vmatpush.msra.mxu0 0.0
    %342 = vmatpush.msra.mxu0 0.0
    %343 = vmatpush.msra.mxu0 0.0
    %344 = vmatpush.msra.mxu0 %v328
    %345 = vmatpush.msra.mxu0 %v327
    %346 = vmatpush.msra.mxu0 %v326
    %347 = vmatpush.msra.mxu0 %v325
    %348 = vmatpush.msra.mxu0 %v324
    %349 = vmatpush.msra.mxu0 %v323
    %350 = vmatpush.msra.mxu0 %v322
    %351 = vmatpush.msra.mxu0 %v321
    %352 = vmatmul.f32.gmra.mxu0 %v334
    %v353 = vpop.f32.mrf.mxu0
    %v354 = vadd.f32 %v331, %v353
    %355 = vdwg.mxu0
    %v356 = vmax.f32 %v354, 0.0
    %v357 = vld [vmem:[%s8] sm:$0xff]
    %v358 = vld [vmem:[%s8 + $0x8] sm:$0xff]
    %v359 = vld [vmem:[%s8 + $0x10] sm:$0xff]
    %v360 = vld [vmem:[%s8 + $0x18] sm:$0xff]
    %v361 = vld [vmem:[%s8 + $0x20] sm:$0xff]
    %v362 = vld [vmem:[%s8 + $0x28] sm:$0xff]
    %v363 = vld [vmem:[%s8 + $0x30] sm:$0xff]
    %v364 = vld [vmem:[%s8 + $0x38] sm:$0xff]
    %v365 = vld [vmem:[%s9] sm:$0x1]
    %v367 = vperm.slane %v365, 0
    %v370 = vsel %vm278, %v356, 0
    %372 = vmatpush.msra.mxu0 0.0
    %373 = vmatpush.msra.mxu0 0.0
    %374 = vmatpush.msra.mxu0 0.0
    %375 = vmatpush.msra.mxu0 0.0
    %376 = vmatpush.msra.mxu0 0.0
    %377 = vmatpush.msra.mxu0 0.0
    %378 = vmatpush.msra.mxu0 0.0
    %379 = vmatpush.msra.mxu0 0.0
    %380 = vmatpush.msra.mxu0 %v364
    %381 = vmatpush.msra.mxu0 %v363
    %382 = vmatpush.msra.mxu0 %v362
    %383 = vmatpush.msra.mxu0 %v361
    %384 = vmatpush.msra.mxu0 %v360
    %385 = vmatpush.msra.mxu0 %v359
    %386 = vmatpush.msra.mxu0 %v358
    %387 = vmatpush.msra.mxu0 %v357
    %388 = vmatmul.f32.gmra.mxu0 %v370
    %v389 = vpop.f32.mrf.mxu0
    %v390 = vadd.f32 %v367, %v389
    %391 = vdwg.mxu0
    %393 = vrot.lane.b32.xlu0 %v390, 64
    %v394 = vpop.permute.xlu0 %393
    %v396 = vsel %vm278, %v356, %v394
    %397 = vst [vmem:[#allocation2] sm:$0xff] %v279
    %398 = vst [vmem:[#allocation2 + $0x8] sm:$0xff] %v396
    // Predicated region
    $region42: #{tpu_custom_call.1} parent=1 // pred_check
      _
    $region43: #{tpu_custom_call.1} parent=1 // pred_check_branch
      %400 = sbr.rel (0) target = $region45
    $region44: #{tpu_custom_call.1} parent=1 // pred_region
      %402 = vsyncadd [#allocation3], 0
      %s404 = sshll.u32 [#allocation2], 4
      %s405 = int_to_ptr.vmem [resolvable:$true] %s404
      %s406 = sshll.u32 %s10, 4
      %s407 = int_to_ptr.hbm [resolvable:$true] %s406
      %409 = dma.vmem_to_hbm [thread:$0]  %s405, 256, %s407, [#allocation3]
    $region45: #{tpu_custom_call.1} parent=1 // pred_fallthru
      _
    // Predicated region
    $region46: #{tpu_custom_call.1} parent=1 // pred_check
      _
    $region47: #{tpu_custom_call.1} parent=1 // pred_check_branch
      %411 = sbr.rel (0) target = $region49
    $region48: #{tpu_custom_call.1} parent=1 // pred_region
      %413 = dma.done [#allocation3], 256
    $region49: #{tpu_custom_call.1} parent=1 // pred_fallthru
      _
    %414 = vsyncpa [#allocation3], 1

</llo_original>
